<compile_context>
chip_gen: v7x
topology: tpu7x:2x2x1
jax: 0.10.0
libtpu: 0.0.40
codegen_flags: <defaults>
</compile_context>

<pallas_src>
import math

import jax
import jax.numpy as jnp
from jax import lax
from jax.experimental import pallas as pl
from jax.experimental.pallas import tpu as pltpu


def _gru_user_kernel(lens_ref, news_ref, wih_ref, whh_ref, bih_ref, bhh_ref, o_ref):
    # lens_ref: (BB, 1) int32   valid history length per row
    # news_ref: (S, BB, H)      time-major news history block (input dtype)
    # wih_ref:  (3, H, H)       [W_ir^T, W_iz^T, W_in^T]  (f32)
    # whh_ref:  (3, H, H)       [W_hr^T, W_hz^T, W_hn^T]  (f32)
    # bih_ref:  (3, 1, H)       [b_ir, b_iz, b_in]
    # bhh_ref:  (3, 1, H)       [b_hr, b_hz, b_hn]
    # o_ref:    (BB, H)         final hidden state per row
    S = news_ref.shape[0]
    BB = news_ref.shape[1]
    H = news_ref.shape[2]

    lens = lens_ref[...]  # (BB, 1) int32

    def step(t, h):
        # Only the per-step (BB, H) slice is upcast (keeps the big slab in its dtype).
        xt = news_ref[t].astype(jnp.float32)                                   # (BB, H)

        gir = jnp.dot(xt, wih_ref[0], preferred_element_type=jnp.float32) + bih_ref[0]
        giz = jnp.dot(xt, wih_ref[1], preferred_element_type=jnp.float32) + bih_ref[1]
        gin = jnp.dot(xt, wih_ref[2], preferred_element_type=jnp.float32) + bih_ref[2]

        ghr = jnp.dot(h, whh_ref[0], preferred_element_type=jnp.float32) + bhh_ref[0]
        ghz = jnp.dot(h, whh_ref[1], preferred_element_type=jnp.float32) + bhh_ref[1]
        ghn = jnp.dot(h, whh_ref[2], preferred_element_type=jnp.float32) + bhh_ref[2]

        r = jax.nn.sigmoid(gir + ghr)
        z = jax.nn.sigmoid(giz + ghz)
        n = jnp.tanh(gin + r * ghn)
        h_new = (1.0 - z) * n + z * h

        # pack_padded_sequence semantics: hidden stops updating after len_b steps.
        return jnp.where(t < lens, h_new, h)

    h0 = jnp.zeros((BB, H), dtype=jnp.float32)
    h = lax.fori_loop(0, S, step, h0)
    o_ref[...] = h.astype(o_ref.dtype)


def _pick_block_b(B, S, H, itemsize, tile_budget_bytes=2 * 1024 * 1024):
    """Batch rows per grid step: full batch when small, else a multiple of 8
    dividing B with the news tile around ~1-2 MiB (re-derive per generation if
    pushing toward v7x's smaller VMEM)."""
    if B <= 8:
        return B
    per_row = S * H * itemsize
    target = max(8, min(B, tile_budget_bytes // max(per_row, 1)))
    best = None
    bb = 8
    while bb <= min(B, target):
        if B % bb == 0:
            best = bb
        bb += 8
    return best if best is not None else B


def rnn_user_encoder(news_embedding, his_mask, w_ih, w_hh, b_ih, b_hh, *, block_b=None):
    """GRU user-encoder forward.

    news_embedding: [B, S, H]
    his_mask:       [B, S]   (1 for valid positions; valid positions form a prefix)
    w_ih, w_hh:     [3H, H]  (PyTorch GRU layout, gate order r, z, n)
    b_ih, b_hh:     [3H]
    returns:        [B, 1, H]
    """
    B, S, H = news_embedding.shape
    dtype = news_embedding.dtype

    # Per-row valid lengths (pack_padded_sequence lens).
    lens = jnp.sum(his_mask.astype(jnp.int32), axis=-1).reshape(B, 1)

    # Time-major layout so the kernel indexes timesteps on the leading ref axis.
    news_t = jnp.transpose(news_embedding, (1, 0, 2))  # (S, B, H)

    # Stack per-gate transposed weights / biases (gate order r, z, n).
    wih_t = jnp.stack([w_ih[0:H].T, w_ih[H:2 * H].T, w_ih[2 * H:3 * H].T]).astype(jnp.float32)
    whh_t = jnp.stack([w_hh[0:H].T, w_hh[H:2 * H].T, w_hh[2 * H:3 * H].T]).astype(jnp.float32)
    bih = jnp.stack([b_ih[0:H], b_ih[H:2 * H], b_ih[2 * H:3 * H]]).reshape(3, 1, H).astype(jnp.float32)
    bhh = jnp.stack([b_hh[0:H], b_hh[H:2 * H], b_hh[2 * H:3 * H]]).reshape(3, 1, H).astype(jnp.float32)

    itemsize = jnp.dtype(dtype).itemsize
    if block_b is None:
        block_b = _pick_block_b(B, S, H, itemsize)
    assert B % block_b == 0
    grid = (B // block_b,)

    # Advisory cost estimate (6 HxH matmuls per token + elementwise gates).
    flops = 2 * B * S * 6 * H * H + 12 * B * S * H
    transcendentals = 3 * B * S * H
    bytes_accessed = (B * S * H) * itemsize + (6 * H * H + 6 * H + B * H + B) * 4

    out = pl.pallas_call(
        _gru_user_kernel,
        out_shape=jax.ShapeDtypeStruct((B, H), dtype),
        grid_spec=pltpu.PrefetchScalarGridSpec(
            num_scalar_prefetch=0,
            grid=grid,
            in_specs=[
                pl.BlockSpec((block_b, 1), lambda i: (i, 0)),        # lens
                pl.BlockSpec((S, block_b, H), lambda i: (0, i, 0)),  # news (time-major)
                pl.BlockSpec((3, H, H), lambda i: (0, 0, 0)),        # W_ih^T (shared)
                pl.BlockSpec((3, H, H), lambda i: (0, 0, 0)),        # W_hh^T (shared)
                pl.BlockSpec((3, 1, H), lambda i: (0, 0, 0)),        # b_ih
                pl.BlockSpec((3, 1, H), lambda i: (0, 0, 0)),        # b_hh
            ],
            out_specs=pl.BlockSpec((block_b, H), lambda i: (i, 0)),  # lane-dense output
        ),
        compiler_params=pltpu.CompilerParams(
            dimension_semantics=("parallel",),
        ),
        cost_estimate=pl.CostEstimate(
            flops=flops, transcendentals=transcendentals, bytes_accessed=bytes_accessed),
    )(lens, news_t, wih_t, whh_t, bih, bhh)

    return out.reshape(B, 1, H)


def _reference_gru(news_embedding, his_mask, w_ih, w_hh, b_ih, b_hh):
    """Pure-JAX GRU with length masking (== GRU over packed padded sequence)."""
    B, S, H = news_embedding.shape
    Wir, Wiz, Win = w_ih[:H], w_ih[H:2 * H], w_ih[2 * H:]
    Whr, Whz, Whn = w_hh[:H], w_hh[H:2 * H], w_hh[2 * H:]
    bir, biz, bin_ = b_ih[:H], b_ih[H:2 * H], b_ih[2 * H:]
    bhr, bhz, bhn = b_hh[:H], b_hh[H:2 * H], b_hh[2 * H:]

    lens = jnp.sum(his_mask.astype(jnp.int32), axis=-1)                              # (B,)
    valid = (jnp.arange(S)[None, :] < lens[:, None]).astype(jnp.float32)             # (B, S)

    hp = jax.lax.Precision.HIGHEST

    def step(h, inputs):
        xt, mt = inputs  # (B, H), (B,)
        r = jax.nn.sigmoid(jnp.dot(xt, Wir.T, precision=hp) + bir +
                           jnp.dot(h, Whr.T, precision=hp) + bhr)
        z = jax.nn.sigmoid(jnp.dot(xt, Wiz.T, precision=hp) + biz +
                           jnp.dot(h, Whz.T, precision=hp) + bhz)
        n = jnp.tanh(jnp.dot(xt, Win.T, precision=hp) + bin_ +
                     r * (jnp.dot(h, Whn.T, precision=hp) + bhn))
        h_new = (1.0 - z) * n + z * h
        h = mt[:, None] * h_new + (1.0 - mt[:, None]) * h
        return h, None

    h0 = jnp.zeros((B, H), jnp.float32)
    xs = (jnp.transpose(news_embedding, (1, 0, 2)).astype(jnp.float32), valid.T)
    hT, _ = lax.scan(step, h0, xs)
    return hT[:, None, :].astype(news_embedding.dtype)


if __name__ == "__main__":
    key = jax.random.PRNGKey(0)
    k_x, k_wih, k_whh, k_bih, k_bhh = jax.random.split(key, 5)

    B, S, H = 2, 8, 32  # batch, history length, hidden_dim

    news_embedding = jax.random.normal(k_x, (B, S, H), dtype=jnp.float32)

    # prefix-valid history mask: row 0 has 8 valid items, row 1 has 5
    true_lens = jnp.array([8, 5], dtype=jnp.int32)
    his_mask = (jnp.arange(S)[None, :] < true_lens[:, None]).astype(jnp.float32)

    # GRU parameters in PyTorch layout: weight_* [3H, H] (gate order r, z, n),
    # orthogonal-initialized weights as in the module; uniform(-1/sqrt(H)) biases.
    ortho = jax.nn.initializers.orthogonal()
    w_ih = ortho(k_wih, (3 * H, H), jnp.float32)
    w_hh = ortho(k_whh, (3 * H, H), jnp.float32)
    bound = 1.0 / math.sqrt(H)
    b_ih = jax.random.uniform(k_bih, (3 * H,), jnp.float32, -bound, bound)
    b_hh = jax.random.uniform(k_bhh, (3 * H,), jnp.float32, -bound, bound)

    out = rnn_user_encoder(news_embedding, his_mask, w_ih, w_hh, b_ih, b_hh)
    out = jax.block_until_ready(out)

    ref = _reference_gru(news_embedding, his_mask, w_ih, w_hh, b_ih, b_hh)
    assert out.shape == (B, 1, H)
    max_err = jnp.max(jnp.abs(out - ref))
    assert jnp.allclose(out, ref, atol=2e-3, rtol=2e-3), f"mismatch vs reference: {max_err}"

    print("KERNEL_OK")
</pallas_src>

<mosaic_0001>
module attributes {stable_mosaic.version = 11 : i64} {
  func.func @_gru_user_kernel(%arg0: i32, %arg1: memref<2x1xi32, #tpu.memory_space<vmem>>, %arg2: memref<8x2x32xf32, #tpu.memory_space<vmem>>, %arg3: memref<3x32x32xf32, #tpu.memory_space<vmem>>, %arg4: memref<3x32x32xf32, #tpu.memory_space<vmem>>, %arg5: memref<3x1x32xf32, #tpu.memory_space<vmem>>, %arg6: memref<3x1x32xf32, #tpu.memory_space<vmem>>, %arg7: memref<2x32xf32, #tpu.memory_space<vmem>>) attributes {dimension_semantics = [#tpu.dimension_semantics<parallel>], iteration_bounds = array<i64: 1>, scalar_prefetch = 0 : i64, scratch_operands = 0 : i64, tpu.core_type = #tpu.core_type<tc>, window_params = [{transform_indices = @transform_0, window_bounds = array<i64: 2, 1>}, {transform_indices = @transform_1, window_bounds = array<i64: 8, 2, 32>}, {pipeline_mode = #tpu.pipeline_mode<synchronous>, transform_indices = @transform_2, window_bounds = array<i64: 3, 32, 32>}, {pipeline_mode = #tpu.pipeline_mode<synchronous>, transform_indices = @transform_3, window_bounds = array<i64: 3, 32, 32>}, {pipeline_mode = #tpu.pipeline_mode<synchronous>, transform_indices = @transform_4, window_bounds = array<i64: 3, 1, 32>}, {pipeline_mode = #tpu.pipeline_mode<synchronous>, transform_indices = @transform_5, window_bounds = array<i64: 3, 1, 32>}, {transform_indices = @transform_6, window_bounds = array<i64: 2, 32>}]} {
    %c0 = arith.constant 0 : index
    %c0_0 = arith.constant 0 : index
    %0 = vector.load %arg1[%c0, %c0_0] : memref<2x1xi32, #tpu.memory_space<vmem>>, vector<2x1xi32>
    %cst = arith.constant 0.000000e+00 : f32
    %1 = vector.broadcast %cst : f32 to vector<2x32xf32>
    %c0_i32 = arith.constant 0 : i32
    %c8_i32 = arith.constant 8 : i32
    %2 = arith.addi %c0_i32, %c8_i32 : i32
    %c1_i32 = arith.constant 1 : i32
    %3 = scf.for %arg8 = %c0_i32 to %2 step %c1_i32 iter_args(%arg9 = %1) -> (vector<2x32xf32>)  : i32 {
      %5 = arith.index_cast %arg8 : i32 to index
      %c0_4 = arith.constant 0 : index
      %c0_5 = arith.constant 0 : index
      %6 = vector.load %arg2[%5, %c0_4, %c0_5] : memref<8x2x32xf32, #tpu.memory_space<vmem>>, vector<1x2x32xf32>
      %7 = vector.shape_cast %6 : vector<1x2x32xf32> to vector<2x32xf32>
      %c0_6 = arith.constant 0 : index
      %c0_7 = arith.constant 0 : index
      %c0_8 = arith.constant 0 : index
      %8 = vector.load %arg3[%c0_6, %c0_7, %c0_8] : memref<3x32x32xf32, #tpu.memory_space<vmem>>, vector<1x32x32xf32>
      %9 = vector.shape_cast %8 : vector<1x32x32xf32> to vector<32x32xf32>
      %cst_9 = arith.constant dense<0.000000e+00> : vector<2x32xf32>
      %10 = tpu.matmul %7, %9, %cst_9 {dimension_numbers = #tpu.dot_dimension_numbers<[1], [0], [0], [1], [0, 0, 1, 1], [], []>} : vector<2x32xf32>, vector<32x32xf32>, vector<2x32xf32> -> vector<2x32xf32>
      %c0_10 = arith.constant 0 : index
      %c0_11 = arith.constant 0 : index
      %c0_12 = arith.constant 0 : index
      %11 = vector.load %arg5[%c0_10, %c0_11, %c0_12] : memref<3x1x32xf32, #tpu.memory_space<vmem>>, vector<1x1x32xf32>
      %12 = vector.shape_cast %11 : vector<1x1x32xf32> to vector<1x32xf32>
      %13 = vector.broadcast %12 : vector<1x32xf32> to vector<2x32xf32>
      %14 = arith.addf %10, %13 : vector<2x32xf32>
      %c1 = arith.constant 1 : index
      %c0_13 = arith.constant 0 : index
      %c0_14 = arith.constant 0 : index
      %15 = vector.load %arg3[%c1, %c0_13, %c0_14] : memref<3x32x32xf32, #tpu.memory_space<vmem>>, vector<1x32x32xf32>
      %16 = vector.shape_cast %15 : vector<1x32x32xf32> to vector<32x32xf32>
      %cst_15 = arith.constant dense<0.000000e+00> : vector<2x32xf32>
      %17 = tpu.matmul %7, %16, %cst_15 {dimension_numbers = #tpu.dot_dimension_numbers<[1], [0], [0], [1], [0, 0, 1, 1], [], []>} : vector<2x32xf32>, vector<32x32xf32>, vector<2x32xf32> -> vector<2x32xf32>
      %c1_16 = arith.constant 1 : index
      %c0_17 = arith.constant 0 : index
      %c0_18 = arith.constant 0 : index
      %18 = vector.load %arg5[%c1_16, %c0_17, %c0_18] : memref<3x1x32xf32, #tpu.memory_space<vmem>>, vector<1x1x32xf32>
      %19 = vector.shape_cast %18 : vector<1x1x32xf32> to vector<1x32xf32>
      %20 = vector.broadcast %19 : vector<1x32xf32> to vector<2x32xf32>
      %21 = arith.addf %17, %20 : vector<2x32xf32>
      %c2 = arith.constant 2 : index
      %c0_19 = arith.constant 0 : index
      %c0_20 = arith.constant 0 : index
      %22 = vector.load %arg3[%c2, %c0_19, %c0_20] : memref<3x32x32xf32, #tpu.memory_space<vmem>>, vector<1x32x32xf32>
      %23 = vector.shape_cast %22 : vector<1x32x32xf32> to vector<32x32xf32>
      %cst_21 = arith.constant dense<0.000000e+00> : vector<2x32xf32>
      %24 = tpu.matmul %7, %23, %cst_21 {dimension_numbers = #tpu.dot_dimension_numbers<[1], [0], [0], [1], [0, 0, 1, 1], [], []>} : vector<2x32xf32>, vector<32x32xf32>, vector<2x32xf32> -> vector<2x32xf32>
      %c2_22 = arith.constant 2 : index
      %c0_23 = arith.constant 0 : index
      %c0_24 = arith.constant 0 : index
      %25 = vector.load %arg5[%c2_22, %c0_23, %c0_24] : memref<3x1x32xf32, #tpu.memory_space<vmem>>, vector<1x1x32xf32>
      %26 = vector.shape_cast %25 : vector<1x1x32xf32> to vector<1x32xf32>
      %27 = vector.broadcast %26 : vector<1x32xf32> to vector<2x32xf32>
      %28 = arith.addf %24, %27 : vector<2x32xf32>
      %c0_25 = arith.constant 0 : index
      %c0_26 = arith.constant 0 : index
      %c0_27 = arith.constant 0 : index
      %29 = vector.load %arg4[%c0_25, %c0_26, %c0_27] : memref<3x32x32xf32, #tpu.memory_space<vmem>>, vector<1x32x32xf32>
      %30 = vector.shape_cast %29 : vector<1x32x32xf32> to vector<32x32xf32>
      %cst_28 = arith.constant dense<0.000000e+00> : vector<2x32xf32>
      %31 = tpu.matmul %arg9, %30, %cst_28 {dimension_numbers = #tpu.dot_dimension_numbers<[1], [0], [0], [1], [0, 0, 1, 1], [], []>} : vector<2x32xf32>, vector<32x32xf32>, vector<2x32xf32> -> vector<2x32xf32>
      %c0_29 = arith.constant 0 : index
      %c0_30 = arith.constant 0 : index
      %c0_31 = arith.constant 0 : index
      %32 = vector.load %arg6[%c0_29, %c0_30, %c0_31] : memref<3x1x32xf32, #tpu.memory_space<vmem>>, vector<1x1x32xf32>
      %33 = vector.shape_cast %32 : vector<1x1x32xf32> to vector<1x32xf32>
      %34 = vector.broadcast %33 : vector<1x32xf32> to vector<2x32xf32>
      %35 = arith.addf %31, %34 : vector<2x32xf32>
      %c1_32 = arith.constant 1 : index
      %c0_33 = arith.constant 0 : index
      %c0_34 = arith.constant 0 : index
      %36 = vector.load %arg4[%c1_32, %c0_33, %c0_34] : memref<3x32x32xf32, #tpu.memory_space<vmem>>, vector<1x32x32xf32>
      %37 = vector.shape_cast %36 : vector<1x32x32xf32> to vector<32x32xf32>
      %cst_35 = arith.constant dense<0.000000e+00> : vector<2x32xf32>
      %38 = tpu.matmul %arg9, %37, %cst_35 {dimension_numbers = #tpu.dot_dimension_numbers<[1], [0], [0], [1], [0, 0, 1, 1], [], []>} : vector<2x32xf32>, vector<32x32xf32>, vector<2x32xf32> -> vector<2x32xf32>
      %c1_36 = arith.constant 1 : index
      %c0_37 = arith.constant 0 : index
      %c0_38 = arith.constant 0 : index
      %39 = vector.load %arg6[%c1_36, %c0_37, %c0_38] : memref<3x1x32xf32, #tpu.memory_space<vmem>>, vector<1x1x32xf32>
      %40 = vector.shape_cast %39 : vector<1x1x32xf32> to vector<1x32xf32>
      %41 = vector.broadcast %40 : vector<1x32xf32> to vector<2x32xf32>
      %42 = arith.addf %38, %41 : vector<2x32xf32>
      %c2_39 = arith.constant 2 : index
      %c0_40 = arith.constant 0 : index
      %c0_41 = arith.constant 0 : index
      %43 = vector.load %arg4[%c2_39, %c0_40, %c0_41] : memref<3x32x32xf32, #tpu.memory_space<vmem>>, vector<1x32x32xf32>
      %44 = vector.shape_cast %43 : vector<1x32x32xf32> to vector<32x32xf32>
      %cst_42 = arith.constant dense<0.000000e+00> : vector<2x32xf32>
      %45 = tpu.matmul %arg9, %44, %cst_42 {dimension_numbers = #tpu.dot_dimension_numbers<[1], [0], [0], [1], [0, 0, 1, 1], [], []>} : vector<2x32xf32>, vector<32x32xf32>, vector<2x32xf32> -> vector<2x32xf32>
      %c2_43 = arith.constant 2 : index
      %c0_44 = arith.constant 0 : index
      %c0_45 = arith.constant 0 : index
      %46 = vector.load %arg6[%c2_43, %c0_44, %c0_45] : memref<3x1x32xf32, #tpu.memory_space<vmem>>, vector<1x1x32xf32>
      %47 = vector.shape_cast %46 : vector<1x1x32xf32> to vector<1x32xf32>
      %48 = vector.broadcast %47 : vector<1x32xf32> to vector<2x32xf32>
      %49 = arith.addf %45, %48 : vector<2x32xf32>
      %50 = arith.addf %14, %35 : vector<2x32xf32>
      %51 = arith.negf %50 : vector<2x32xf32>
      %52 = math.exp %51 : vector<2x32xf32>
      %cst_46 = arith.constant 1.000000e+00 : f32
      %53 = vector.broadcast %cst_46 : f32 to vector<2x32xf32>
      %54 = arith.addf %53, %52 : vector<2x32xf32>
      %55 = arith.divf %53, %54 : vector<2x32xf32>
      %56 = arith.addf %21, %42 : vector<2x32xf32>
      %57 = arith.negf %56 : vector<2x32xf32>
      %58 = math.exp %57 : vector<2x32xf32>
      %cst_47 = arith.constant 1.000000e+00 : f32
      %59 = vector.broadcast %cst_47 : f32 to vector<2x32xf32>
      %60 = arith.addf %59, %58 : vector<2x32xf32>
      %61 = arith.divf %59, %60 : vector<2x32xf32>
      %62 = arith.mulf %55, %49 : vector<2x32xf32>
      %63 = arith.addf %28, %62 : vector<2x32xf32>
      %64 = math.tanh %63 : vector<2x32xf32>
      %cst_48 = arith.constant 1.000000e+00 : f32
      %65 = vector.broadcast %cst_48 : f32 to vector<2x32xf32>
      %66 = arith.subf %65, %61 : vector<2x32xf32>
      %67 = arith.mulf %66, %64 : vector<2x32xf32>
      %68 = arith.mulf %61, %arg9 : vector<2x32xf32>
      %69 = arith.addf %67, %68 : vector<2x32xf32>
      %70 = vector.broadcast %arg8 : i32 to vector<2x1xi32>
      %71 = arith.cmpi slt, %70, %0 : vector<2x1xi32>
      %72 = vector.shape_cast %71 : vector<2x1xi1> to vector<2x1xi1>
      %73 = vector.broadcast %72 : vector<2x1xi1> to vector<2x32xi1>
      %74 = arith.select %73, %69, %arg9 : vector<2x32xi1>, vector<2x32xf32>
      scf.yield %74 : vector<2x32xf32>
    }
    %c8_i32_1 = arith.constant 8 : i32
    %c0_2 = arith.constant 0 : index
    %c0_3 = arith.constant 0 : index
    %4 = vector.load %arg7[%c0_2, %c0_3] : memref<2x32xf32, #tpu.memory_space<vmem>>, vector<2x32xf32>
    tpu.vector_store %arg7[%c0_2, %c0_3], %3 {strides = array<i32>} : memref<2x32xf32, #tpu.memory_space<vmem>>, vector<2x32xf32>,
    return
  }
  func.func @transform_0(%arg0: i32) -> (i32, i32) {
    %c0_i32 = arith.constant 0 : i32
    %c0_i32_0 = arith.constant 0 : i32
    return %arg0, %c0_i32 : i32, i32
  }
  func.func @transform_1(%arg0: i32) -> (i32, i32, i32) {
    %c0_i32 = arith.constant 0 : i32
    %c0_i32_0 = arith.constant 0 : i32
    %c0_i32_1 = arith.constant 0 : i32
    return %c0_i32, %arg0, %c0_i32_0 : i32, i32, i32
  }
  func.func @transform_2(%arg0: i32) -> (i32, i32, i32) {
    %c0_i32 = arith.constant 0 : i32
    %c0_i32_0 = arith.constant 0 : i32
    %c0_i32_1 = arith.constant 0 : i32
    %c0_i32_2 = arith.constant 0 : i32
    return %c0_i32, %c0_i32_0, %c0_i32_1 : i32, i32, i32
  }
  func.func @transform_3(%arg0: i32) -> (i32, i32, i32) {
    %c0_i32 = arith.constant 0 : i32
    %c0_i32_0 = arith.constant 0 : i32
    %c0_i32_1 = arith.constant 0 : i32
    %c0_i32_2 = arith.constant 0 : i32
    return %c0_i32, %c0_i32_0, %c0_i32_1 : i32, i32, i32
  }
  func.func @transform_4(%arg0: i32) -> (i32, i32, i32) {
    %c0_i32 = arith.constant 0 : i32
    %c0_i32_0 = arith.constant 0 : i32
    %c0_i32_1 = arith.constant 0 : i32
    %c0_i32_2 = arith.constant 0 : i32
    return %c0_i32, %c0_i32_0, %c0_i32_1 : i32, i32, i32
  }
  func.func @transform_5(%arg0: i32) -> (i32, i32, i32) {
    %c0_i32 = arith.constant 0 : i32
    %c0_i32_0 = arith.constant 0 : i32
    %c0_i32_1 = arith.constant 0 : i32
    %c0_i32_2 = arith.constant 0 : i32
    return %c0_i32, %c0_i32_0, %c0_i32_1 : i32, i32, i32
  }
  func.func @transform_6(%arg0: i32) -> (i32, i32) {
    %c0_i32 = arith.constant 0 : i32
    %c0_i32_0 = arith.constant 0 : i32
    return %arg0, %c0_i32 : i32, i32
  }
}

</mosaic_0001>

<llo_original>
// kernel: tpu_custom_call.1
$region0: #{tpu_custom_call.1}
  #allocation0 [shape = 'u32[]', space=smem, size = 0x4, offset = 0x4, fixed_abs, tag = 'smem constant byte address 0x4 - core index']
  #allocation1 [shape = 'u32[144,128]{1,0:T(1,128)}', space=vmem, size = 0x12000, scoped, tag = 'internal scratch']
  %s0 = inlined_call_operand.vmem [shape: s32[2,1], index: 0, kind: input, shape index: {}]
  %s1 = inlined_call_operand.hbm [shape: f32[8,2,32], index: 1, kind: input, shape index: {}]
  %s2 = inlined_call_operand.hbm [shape: f32[3,32,32], index: 2, kind: input, shape index: {}]
  %s3 = inlined_call_operand.hbm [shape: f32[3,32,32], index: 3, kind: input, shape index: {}]
  %s4 = inlined_call_operand.vmem [shape: f32[3,1,32], index: 4, kind: input, shape index: {}]
  %s5 = inlined_call_operand.vmem [shape: f32[3,1,32], index: 5, kind: input, shape index: {}]
  %s6 = inlined_call_operand.hbm [shape: f32[2,32], index: 6, kind: output, shape index: {}]
  %s7 = sld [smem:[#allocation0]]
  $region53: #{tpu_custom_call.1} parent=0
    _
  %s9 = ssub.s32 1, %s7
  %s10 = scalar_select 0, %s9, %s7
  $region1: #{tpu_custom_call.1} parent=0
    #allocation2 [shape = 'u8[8192]{0}', space=vmem, size = 0x2000, scoped, tag = 'input window, operand 1, single buffered']
    #allocation3 [shape = 's32[1]{0}', space=sflag, size = 0x4, scoped, tag = 'scoped memory for tpu_custom_call.1']
    #allocation4 [shape = 's32[1]{0}', space=sflag, size = 0x4, scoped, tag = 'scoped memory for tpu_custom_call.1']
    #allocation5 [shape = 'u8[49152]{0}', space=vmem, size = 0xc000, scoped, tag = 'input window, operand 2, single buffered']
    #allocation6 [shape = 's32[1]{0}', space=sflag, size = 0x4, scoped, tag = 'scoped memory for tpu_custom_call.1']
    #allocation7 [shape = 'u8[49152]{0}', space=vmem, size = 0xc000, scoped, tag = 'input window, operand 3, single buffered']
    #allocation8 [shape = 'u8[1024]{0}', space=vmem, size = 0x400, scoped, tag = 'output window, operand 0, single buffered']
    %11 = vsyncpa [#allocation3], 0
    %12 = vsyncpa [#allocation6], 0
    %13 = vsyncpa [#allocation4], 0
    // Predicated region
    $region2: #{tpu_custom_call.1} parent=1 // pred_check
      _
    $region3: #{tpu_custom_call.1} parent=1 // pred_check_branch
      %15 = sbr.rel (0) target = $region5
    $region4: #{tpu_custom_call.1} parent=1 // pred_region
      _
    $region5: #{tpu_custom_call.1} parent=1 // pred_fallthru
      _
    // Predicated region
    $region6: #{tpu_custom_call.1} parent=1 // pred_check
      _
    $region7: #{tpu_custom_call.1} parent=1 // pred_check_branch
      %17 = sbr.rel (0) target = $region9
    $region8: #{tpu_custom_call.1} parent=1 // pred_region
      %s19 = ssub.s32 256, 256
      %20 = vsyncadd [#allocation3], %s19
      %s21 = sshll.u32 [#allocation2], 4
      %s22 = int_to_ptr.vmem [resolvable:$true] %s21
      %27 = dma.hbm_to_vmem [thread:$0]  %s1, 256, %s22, [#allocation3], 32, 32, 2
    $region9: #{tpu_custom_call.1} parent=1 // pred_fallthru
      _
    // Predicated region
    $region10: #{tpu_custom_call.1} parent=1 // pred_check
      _
    $region11: #{tpu_custom_call.1} parent=1 // pred_check_branch
      %29 = sbr.rel (0) target = $region13
    $region12: #{tpu_custom_call.1} parent=1 // pred_region
      %s31 = ssub.s32 1536, 1536
      %32 = vsyncadd [#allocation6], %s31
      %s33 = sshll.u32 [#allocation5], 4
      %s34 = int_to_ptr.vmem [resolvable:$true] %s33
      %39 = dma.hbm_to_vmem [thread:$0]  %s2, 1536, %s34, [#allocation6], 128, 128, 8
    $region13: #{tpu_custom_call.1} parent=1 // pred_fallthru
      _
    // Predicated region
    $region14: #{tpu_custom_call.1} parent=1 // pred_check
      _
    $region15: #{tpu_custom_call.1} parent=1 // pred_check_branch
      %41 = sbr.rel (0) target = $region17
    $region16: #{tpu_custom_call.1} parent=1 // pred_region
      %s43 = ssub.s32 1536, 1536
      %44 = vsyncadd [#allocation6], %s43
      %s45 = sshll.u32 [#allocation7], 4
      %s46 = int_to_ptr.vmem [resolvable:$true] %s45
      %51 = dma.hbm_to_vmem [thread:$0]  %s3, 1536, %s46, [#allocation6], 128, 128, 8
    $region17: #{tpu_custom_call.1} parent=1 // pred_fallthru
      _
    // Predicated region
    $region18: #{tpu_custom_call.1} parent=1 // pred_check
      _
    $region19: #{tpu_custom_call.1} parent=1 // pred_check_branch
      %53 = sbr.rel (0) target = $region21
    $region20: #{tpu_custom_call.1} parent=1 // pred_region
      _
    $region21: #{tpu_custom_call.1} parent=1 // pred_fallthru
      _
    // Predicated region
    $region22: #{tpu_custom_call.1} parent=1 // pred_check
      _
    $region23: #{tpu_custom_call.1} parent=1 // pred_check_branch
      %55 = sbr.rel (0) target = $region25
    $region24: #{tpu_custom_call.1} parent=1 // pred_region
      _
    $region25: #{tpu_custom_call.1} parent=1 // pred_fallthru
      _
    // Predicated region
    $region26: #{tpu_custom_call.1} parent=1 // pred_check
      _
    $region27: #{tpu_custom_call.1} parent=1 // pred_check_branch
      %57 = sbr.rel (0) target = $region29
    $region28: #{tpu_custom_call.1} parent=1 // pred_region
      %58 = dma.done [#allocation3], 256
    $region29: #{tpu_custom_call.1} parent=1 // pred_fallthru
      _
    // Predicated region
    $region30: #{tpu_custom_call.1} parent=1 // pred_check
      _
    $region31: #{tpu_custom_call.1} parent=1 // pred_check_branch
      %60 = sbr.rel (0) target = $region33
    $region32: #{tpu_custom_call.1} parent=1 // pred_region
      %61 = dma.done [#allocation6], 1536
    $region33: #{tpu_custom_call.1} parent=1 // pred_fallthru
      _
    // Predicated region
    $region34: #{tpu_custom_call.1} parent=1 // pred_check
      _
    $region35: #{tpu_custom_call.1} parent=1 // pred_check_branch
      %63 = sbr.rel (0) target = $region37
    $region36: #{tpu_custom_call.1} parent=1 // pred_region
      %64 = dma.done [#allocation6], 1536
    $region37: #{tpu_custom_call.1} parent=1 // pred_fallthru
      _
    %v65 = vld [vmem:[%s0] sm:$0x3]
    loop: start=0, step=1, limit=8
    $region38: #{tpu_custom_call.1} parent=1 // loop_pre_header
      _
    $region39: #{tpu_custom_call.1} parent=1 // loop_header
      %s67 = sphi 0, %s71
      %p68 = scmp.ge.s32.totalorder %s67, 8
      %v72 = vphi 0.0, %v605
    $region40: #{tpu_custom_call.1} parent=1 // loop_header_branch
      %70 = sbr.rel (%p68) target = $region44
    $region41: #{tpu_custom_call.1} parent=1 // loop_body
      %s73 = smul.u32 %s67, 2
      %s74 = scalar_lea.vmem [#allocation2], %s73
      %v75 = vld [vmem:[%s74] sm:$0x3]
      %v76 = vld [vmem:[#allocation5] sm:$0xff]
      %v77 = vld [vmem:[#allocation5 + $0x8] sm:$0xff]
      %v78 = vld [vmem:[#allocation5 + $0x10] sm:$0xff]
      %v79 = vld [vmem:[#allocation5 + $0x18] sm:$0xff]
      %v80 = vld [vmem:[%s4] sm:$0x1]
      %v82 = vlaneseq
      %v83 = vshrl.u32 %v82, 7
      %v84 = vsub.s32 0, %v83
      %v85 = vrot.slane %v80, %v84
      %vm87 = vcmask 261120
      %v89 = vsel %vm87, %v75, 0
      %91 = vmatprep.subr.mxu0 0.0
      %92 = vmatpush1.msra.mxu0 %v76
      %93 = vmatprep.subr.mxu0 0.0
      %94 = vmatpush1.msra.mxu0 %v77
      %95 = vmatprep.subr.mxu0 0.0
      %96 = vmatpush1.msra.mxu0 %v78
      %97 = vmatprep.subr.mxu0 0.0
      %98 = vmatpush1.msra.mxu0 %v79
      %99 = vmatprep.subr.mxu0 0.0
      %100 = vmatpush1.msra.mxu0 0.0
      %101 = vmatprep.subr.mxu0 0.0
      %102 = vmatpush1.msra.mxu0 0.0
      %103 = vmatprep.subr.mxu0 0.0
      %104 = vmatpush1.msra.mxu0 0.0
      %105 = vmatprep.subr.mxu0 0.0
      %106 = vmatpush1.msra.mxu0 0.0
      %107 = vmatprep.subr.mxu0 0.0
      %108 = vmatpush1.msra.mxu0 0.0
      %109 = vmatprep.subr.mxu0 0.0
      %110 = vmatpush1.msra.mxu0 0.0
      %111 = vmatprep.subr.mxu0 0.0
      %112 = vmatpush1.msra.mxu0 0.0
      %113 = vmatprep.subr.mxu0 0.0
      %114 = vmatpush1.msra.mxu0 0.0
      %115 = vmatprep.subr.mxu0 0.0
      %116 = vmatpush1.msra.mxu0 0.0
      %117 = vmatprep.subr.mxu0 0.0
      %118 = vmatpush1.msra.mxu0 0.0
      %119 = vmatprep.subr.mxu0 0.0
      %120 = vmatpush1.msra.mxu0 0.0
      %121 = vmatprep.subr.mxu0 0.0
      %122 = vmatpush1.msra.mxu0 0.0
      %123 = vmatprep.subr.mxu0 0.0
      %124 = vmatpush1.msra.mxu0 0.0
      %125 = vmatprep.subr.mxu0 0.0
      %126 = vmatpush1.msra.mxu0 0.0
      %127 = vmatprep.subr.mxu0 0.0
      %128 = vmatpush1.msra.mxu0 0.0
      %129 = vmatprep.subr.mxu0 0.0
      %130 = vmatpush1.msra.mxu0 0.0
      %131 = vmatprep.subr.mxu0 0.0
      %132 = vmatpush1.msra.mxu0 0.0
      %133 = vmatprep.subr.mxu0 0.0
      %134 = vmatpush1.msra.mxu0 0.0
      %135 = vmatprep.subr.mxu0 0.0
      %136 = vmatpush1.msra.mxu0 0.0
      %137 = vmatprep.subr.mxu0 0.0
      %138 = vmatpush1.msra.mxu0 0.0
      %139 = vmatprep.subr.mxu0 0.0
      %140 = vmatpush1.msra.mxu0 0.0
      %141 = vmatprep.subr.mxu0 0.0
      %142 = vmatpush1.msra.mxu0 0.0
      %143 = vmatprep.subr.mxu0 0.0
      %144 = vmatpush1.msra.mxu0 0.0
      %145 = vmatprep.subr.mxu0 0.0
      %146 = vmatpush1.msra.mxu0 0.0
      %147 = vmatprep.subr.mxu0 0.0
      %148 = vmatpush1.msra.mxu0 0.0
      %149 = vmatprep.subr.mxu0 0.0
      %150 = vmatpush1.msra.mxu0 0.0
      %151 = vmatprep.subr.mxu0 0.0
      %152 = vmatpush1.msra.mxu0 0.0
      %153 = vmatprep.subr.mxu0 0.0
      %154 = vmatpush1.msra.mxu0 0.0
      %155 = vmatprep.mubr.f32.mxu0 0.0
      %156 = vmatmul.mubr.f32.gmra.mrb[0].mxu0 %v89
      %v157 = vpop.f32.mrb[0].mxu0
      %v158 = vadd.f32 %v85, %v157
      %v159 = vpop.f32.mrb[0].mxu0
      %160 = vdwg.mxu0
      %s161 = scalar_lea.vmem [#allocation5], 32
      %v162 = vld [vmem:[%s161] sm:$0xff]
      %v163 = vld [vmem:[%s161 + $0x8] sm:$0xff]
      %v164 = vld [vmem:[%s161 + $0x10] sm:$0xff]
      %v165 = vld [vmem:[%s161 + $0x18] sm:$0xff]
      %s166 = scalar_lea.vmem %s4, 1
      %v167 = vld [vmem:[%s166] sm:$0x1]
      %v169 = vlaneseq
      %v170 = vshrl.u32 %v169, 7
      %v171 = vsub.s32 0, %v170
      %v172 = vrot.slane %v167, %v171
      %174 = vmatprep.subr.mxu0 0.0
      %175 = vmatpush1.msra.mxu0 %v162
      %176 = vmatprep.subr.mxu0 0.0
      %177 = vmatpush1.msra.mxu0 %v163
      %178 = vmatprep.subr.mxu0 0.0
      %179 = vmatpush1.msra.mxu0 %v164
      %180 = vmatprep.subr.mxu0 0.0
      %181 = vmatpush1.msra.mxu0 %v165
      %182 = vmatprep.subr.mxu0 0.0
      %183 = vmatpush1.msra.mxu0 0.0
      %184 = vmatprep.subr.mxu0 0.0
      %185 = vmatpush1.msra.mxu0 0.0
      %186 = vmatprep.subr.mxu0 0.0
      %187 = vmatpush1.msra.mxu0 0.0
      %188 = vmatprep.subr.mxu0 0.0
      %189 = vmatpush1.msra.mxu0 0.0
      %190 = vmatprep.subr.mxu0 0.0
      %191 = vmatpush1.msra.mxu0 0.0
      %192 = vmatprep.subr.mxu0 0.0
      %193 = vmatpush1.msra.mxu0 0.0
      %194 = vmatprep.subr.mxu0 0.0
      %195 = vmatpush1.msra.mxu0 0.0
      %196 = vmatprep.subr.mxu0 0.0
      %197 = vmatpush1.msra.mxu0 0.0
      %198 = vmatprep.subr.mxu0 0.0
      %199 = vmatpush1.msra.mxu0 0.0
      %200 = vmatprep.subr.mxu0 0.0
      %201 = vmatpush1.msra.mxu0 0.0
      %202 = vmatprep.subr.mxu0 0.0
      %203 = vmatpush1.msra.mxu0 0.0
      %204 = vmatprep.subr.mxu0 0.0
      %205 = vmatpush1.msra.mxu0 0.0
      %206 = vmatprep.subr.mxu0 0.0
      %207 = vmatpush1.msra.mxu0 0.0
      %208 = vmatprep.subr.mxu0 0.0
      %209 = vmatpush1.msra.mxu0 0.0
      %210 = vmatprep.subr.mxu0 0.0
      %211 = vmatpush1.msra.mxu0 0.0
      %212 = vmatprep.subr.mxu0 0.0
      %213 = vmatpush1.msra.mxu0 0.0
      %214 = vmatprep.subr.mxu0 0.0
      %215 = vmatpush1.msra.mxu0 0.0
      %216 = vmatprep.subr.mxu0 0.0
      %217 = vmatpush1.msra.mxu0 0.0
      %218 = vmatprep.subr.mxu0 0.0
      %219 = vmatpush1.msra.mxu0 0.0
      %220 = vmatprep.subr.mxu0 0.0
      %221 = vmatpush1.msra.mxu0 0.0
      %222 = vmatprep.subr.mxu0 0.0
      %223 = vmatpush1.msra.mxu0 0.0
      %224 = vmatprep.subr.mxu0 0.0
      %225 = vmatpush1.msra.mxu0 0.0
      %226 = vmatprep.subr.mxu0 0.0
      %227 = vmatpush1.msra.mxu0 0.0
      %228 = vmatprep.subr.mxu0 0.0
      %229 = vmatpush1.msra.mxu0 0.0
      %230 = vmatprep.subr.mxu0 0.0
      %231 = vmatpush1.msra.mxu0 0.0
      %232 = vmatprep.subr.mxu0 0.0
      %233 = vmatpush1.msra.mxu0 0.0
      %234 = vmatprep.subr.mxu0 0.0
      %235 = vmatpush1.msra.mxu0 0.0
      %236 = vmatprep.subr.mxu0 0.0
      %237 = vmatpush1.msra.mxu0 0.0
      %238 = vmatprep.mubr.f32.mxu0 0.0
      %239 = vmatmul.mubr.f32.gmra.mrb[0].mxu0 %v89
      %v240 = vpop.f32.mrb[0].mxu0
      %v241 = vadd.f32 %v172, %v240
      %v242 = vpop.f32.mrb[0].mxu0
      %243 = vdwg.mxu0
      %s244 = scalar_lea.vmem [#allocation5], 64
      %v245 = vld [vmem:[%s244] sm:$0xff]
      %v246 = vld [vmem:[%s244 + $0x8] sm:$0xff]
      %v247 = vld [vmem:[%s244 + $0x10] sm:$0xff]
      %v248 = vld [vmem:[%s244 + $0x18] sm:$0xff]
      %s249 = scalar_lea.vmem %s4, 2
      %v250 = vld [vmem:[%s249] sm:$0x1]
      %v252 = vlaneseq
      %v253 = vshrl.u32 %v252, 7
      %v254 = vsub.s32 0, %v253
      %v255 = vrot.slane %v250, %v254
      %257 = vmatprep.subr.mxu0 0.0
      %258 = vmatpush1.msra.mxu0 %v245
      %259 = vmatprep.subr.mxu0 0.0
      %260 = vmatpush1.msra.mxu0 %v246
      %261 = vmatprep.subr.mxu0 0.0
      %262 = vmatpush1.msra.mxu0 %v247
      %263 = vmatprep.subr.mxu0 0.0
      %264 = vmatpush1.msra.mxu0 %v248
      %265 = vmatprep.subr.mxu0 0.0
      %266 = vmatpush1.msra.mxu0 0.0
      %267 = vmatprep.subr.mxu0 0.0
      %268 = vmatpush1.msra.mxu0 0.0
      %269 = vmatprep.subr.mxu0 0.0
      %270 = vmatpush1.msra.mxu0 0.0
      %271 = vmatprep.subr.mxu0 0.0
      %272 = vmatpush1.msra.mxu0 0.0
      %273 = vmatprep.subr.mxu0 0.0
      %274 = vmatpush1.msra.mxu0 0.0
      %275 = vmatprep.subr.mxu0 0.0
      %276 = vmatpush1.msra.mxu0 0.0
      %277 = vmatprep.subr.mxu0 0.0
      %278 = vmatpush1.msra.mxu0 0.0
      %279 = vmatprep.subr.mxu0 0.0
      %280 = vmatpush1.msra.mxu0 0.0
      %281 = vmatprep.subr.mxu0 0.0
      %282 = vmatpush1.msra.mxu0 0.0
      %283 = vmatprep.subr.mxu0 0.0
      %284 = vmatpush1.msra.mxu0 0.0
      %285 = vmatprep.subr.mxu0 0.0
      %286 = vmatpush1.msra.mxu0 0.0
      %287 = vmatprep.subr.mxu0 0.0
      %288 = vmatpush1.msra.mxu0 0.0
      %289 = vmatprep.subr.mxu0 0.0
      %290 = vmatpush1.msra.mxu0 0.0
      %291 = vmatprep.subr.mxu0 0.0
      %292 = vmatpush1.msra.mxu0 0.0
      %293 = vmatprep.subr.mxu0 0.0
      %294 = vmatpush1.msra.mxu0 0.0
      %295 = vmatprep.subr.mxu0 0.0
      %296 = vmatpush1.msra.mxu0 0.0
      %297 = vmatprep.subr.mxu0 0.0
      %298 = vmatpush1.msra.mxu0 0.0
      %299 = vmatprep.subr.mxu0 0.0
      %300 = vmatpush1.msra.mxu0 0.0
      %301 = vmatprep.subr.mxu0 0.0
      %302 = vmatpush1.msra.mxu0 0.0
      %303 = vmatprep.subr.mxu0 0.0
      %304 = vmatpush1.msra.mxu0 0.0
      %305 = vmatprep.subr.mxu0 0.0
      %306 = vmatpush1.msra.mxu0 0.0
      %307 = vmatprep.subr.mxu0 0.0
      %308 = vmatpush1.msra.mxu0 0.0
      %309 = vmatprep.subr.mxu0 0.0
      %310 = vmatpush1.msra.mxu0 0.0
      %311 = vmatprep.subr.mxu0 0.0
      %312 = vmatpush1.msra.mxu0 0.0
      %313 = vmatprep.subr.mxu0 0.0
      %314 = vmatpush1.msra.mxu0 0.0
      %315 = vmatprep.subr.mxu0 0.0
      %316 = vmatpush1.msra.mxu0 0.0
      %317 = vmatprep.subr.mxu0 0.0
      %318 = vmatpush1.msra.mxu0 0.0
      %319 = vmatprep.subr.mxu0 0.0
      %320 = vmatpush1.msra.mxu0 0.0
      %321 = vmatprep.mubr.f32.mxu0 0.0
      %322 = vmatmul.mubr.f32.gmra.mrb[0].mxu0 %v89
      %v323 = vpop.f32.mrb[0].mxu0
      %v324 = vadd.f32 %v255, %v323
      %v325 = vpop.f32.mrb[0].mxu0
      %326 = vdwg.mxu0
      %v327 = vld [vmem:[#allocation7] sm:$0xff]
      %v328 = vld [vmem:[#allocation7 + $0x8] sm:$0xff]
      %v329 = vld [vmem:[#allocation7 + $0x10] sm:$0xff]
      %v330 = vld [vmem:[#allocation7 + $0x18] sm:$0xff]
      %v331 = vld [vmem:[%s5] sm:$0x1]
      %v333 = vlaneseq
      %v334 = vshrl.u32 %v333, 7
      %v335 = vsub.s32 0, %v334
      %v336 = vrot.slane %v331, %v335
      %v339 = vsel %vm87, %v72, 0
      %341 = vmatprep.subr.mxu0 0.0
      %342 = vmatpush1.msra.mxu0 %v327
      %343 = vmatprep.subr.mxu0 0.0
      %344 = vmatpush1.msra.mxu0 %v328
      %345 = vmatprep.subr.mxu0 0.0
      %346 = vmatpush1.msra.mxu0 %v329
      %347 = vmatprep.subr.mxu0 0.0
      %348 = vmatpush1.msra.mxu0 %v330
      %349 = vmatprep.subr.mxu0 0.0
      %350 = vmatpush1.msra.mxu0 0.0
      %351 = vmatprep.subr.mxu0 0.0
      %352 = vmatpush1.msra.mxu0 0.0
      %353 = vmatprep.subr.mxu0 0.0
      %354 = vmatpush1.msra.mxu0 0.0
      %355 = vmatprep.subr.mxu0 0.0
      %356 = vmatpush1.msra.mxu0 0.0
      %357 = vmatprep.subr.mxu0 0.0
      %358 = vmatpush1.msra.mxu0 0.0
      %359 = vmatprep.subr.mxu0 0.0
      %360 = vmatpush1.msra.mxu0 0.0
      %361 = vmatprep.subr.mxu0 0.0
      %362 = vmatpush1.msra.mxu0 0.0
      %363 = vmatprep.subr.mxu0 0.0
      %364 = vmatpush1.msra.mxu0 0.0
      %365 = vmatprep.subr.mxu0 0.0
      %366 = vmatpush1.msra.mxu0 0.0
      %367 = vmatprep.subr.mxu0 0.0
      %368 = vmatpush1.msra.mxu0 0.0
      %369 = vmatprep.subr.mxu0 0.0
      %370 = vmatpush1.msra.mxu0 0.0
      %371 = vmatprep.subr.mxu0 0.0
      %372 = vmatpush1.msra.mxu0 0.0
      %373 = vmatprep.subr.mxu0 0.0
      %374 = vmatpush1.msra.mxu0 0.0
      %375 = vmatprep.subr.mxu0 0.0
      %376 = vmatpush1.msra.mxu0 0.0
      %377 = vmatprep.subr.mxu0 0.0
      %378 = vmatpush1.msra.mxu0 0.0
      %379 = vmatprep.subr.mxu0 0.0
      %380 = vmatpush1.msra.mxu0 0.0
      %381 = vmatprep.subr.mxu0 0.0
      %382 = vmatpush1.msra.mxu0 0.0
      %383 = vmatprep.subr.mxu0 0.0
      %384 = vmatpush1.msra.mxu0 0.0
      %385 = vmatprep.subr.mxu0 0.0
      %386 = vmatpush1.msra.mxu0 0.0
      %387 = vmatprep.subr.mxu0 0.0
      %388 = vmatpush1.msra.mxu0 0.0
      %389 = vmatprep.subr.mxu0 0.0
      %390 = vmatpush1.msra.mxu0 0.0
      %391 = vmatprep.subr.mxu0 0.0
      %392 = vmatpush1.msra.mxu0 0.0
      %393 = vmatprep.subr.mxu0 0.0
      %394 = vmatpush1.msra.mxu0 0.0
      %395 = vmatprep.subr.mxu0 0.0
      %396 = vmatpush1.msra.mxu0 0.0
      %397 = vmatprep.subr.mxu0 0.0
      %398 = vmatpush1.msra.mxu0 0.0
      %399 = vmatprep.subr.mxu0 0.0
      %400 = vmatpush1.msra.mxu0 0.0
      %401 = vmatprep.subr.mxu0 0.0
      %402 = vmatpush1.msra.mxu0 0.0
      %403 = vmatprep.subr.mxu0 0.0
      %404 = vmatpush1.msra.mxu0 0.0
      %405 = vmatprep.mubr.f32.mxu0 0.0
      %406 = vmatmul.mubr.f32.gmra.mrb[0].mxu0 %v339
      %v407 = vpop.f32.mrb[0].mxu0
      %v408 = vadd.f32 %v336, %v407
      %v409 = vpop.f32.mrb[0].mxu0
      %410 = vdwg.mxu0
      %s411 = scalar_lea.vmem [#allocation7], 32
      %v412 = vld [vmem:[%s411] sm:$0xff]
      %v413 = vld [vmem:[%s411 + $0x8] sm:$0xff]
      %v414 = vld [vmem:[%s411 + $0x10] sm:$0xff]
      %v415 = vld [vmem:[%s411 + $0x18] sm:$0xff]
      %s416 = scalar_lea.vmem %s5, 1
      %v417 = vld [vmem:[%s416] sm:$0x1]
      %v419 = vlaneseq
      %v420 = vshrl.u32 %v419, 7
      %v421 = vsub.s32 0, %v420
      %v422 = vrot.slane %v417, %v421
      %424 = vmatprep.subr.mxu0 0.0
      %425 = vmatpush1.msra.mxu0 %v412
      %426 = vmatprep.subr.mxu0 0.0
      %427 = vmatpush1.msra.mxu0 %v413
      %428 = vmatprep.subr.mxu0 0.0
      %429 = vmatpush1.msra.mxu0 %v414
      %430 = vmatprep.subr.mxu0 0.0
      %431 = vmatpush1.msra.mxu0 %v415
      %432 = vmatprep.subr.mxu0 0.0
      %433 = vmatpush1.msra.mxu0 0.0
      %434 = vmatprep.subr.mxu0 0.0
      %435 = vmatpush1.msra.mxu0 0.0
      %436 = vmatprep.subr.mxu0 0.0
      %437 = vmatpush1.msra.mxu0 0.0
      %438 = vmatprep.subr.mxu0 0.0
      %439 = vmatpush1.msra.mxu0 0.0
      %440 = vmatprep.subr.mxu0 0.0
      %441 = vmatpush1.msra.mxu0 0.0
      %442 = vmatprep.subr.mxu0 0.0
      %443 = vmatpush1.msra.mxu0 0.0
      %444 = vmatprep.subr.mxu0 0.0
      %445 = vmatpush1.msra.mxu0 0.0
      %446 = vmatprep.subr.mxu0 0.0
      %447 = vmatpush1.msra.mxu0 0.0
      %448 = vmatprep.subr.mxu0 0.0
      %449 = vmatpush1.msra.mxu0 0.0
      %450 = vmatprep.subr.mxu0 0.0
      %451 = vmatpush1.msra.mxu0 0.0
      %452 = vmatprep.subr.mxu0 0.0
      %453 = vmatpush1.msra.mxu0 0.0
      %454 = vmatprep.subr.mxu0 0.0
      %455 = vmatpush1.msra.mxu0 0.0
      %456 = vmatprep.subr.mxu0 0.0
      %457 = vmatpush1.msra.mxu0 0.0
      %458 = vmatprep.subr.mxu0 0.0
      %459 = vmatpush1.msra.mxu0 0.0
      %460 = vmatprep.subr.mxu0 0.0
      %461 = vmatpush1.msra.mxu0 0.0
      %462 = vmatprep.subr.mxu0 0.0
      %463 = vmatpush1.msra.mxu0 0.0
      %464 = vmatprep.subr.mxu0 0.0
      %465 = vmatpush1.msra.mxu0 0.0
      %466 = vmatprep.subr.mxu0 0.0
      %467 = vmatpush1.msra.mxu0 0.0
      %468 = vmatprep.subr.mxu0 0.0
      %469 = vmatpush1.msra.mxu0 0.0
      %470 = vmatprep.subr.mxu0 0.0
      %471 = vmatpush1.msra.mxu0 0.0
      %472 = vmatprep.subr.mxu0 0.0
      %473 = vmatpush1.msra.mxu0 0.0
      %474 = vmatprep.subr.mxu0 0.0
      %475 = vmatpush1.msra.mxu0 0.0
      %476 = vmatprep.subr.mxu0 0.0
      %477 = vmatpush1.msra.mxu0 0.0
      %478 = vmatprep.subr.mxu0 0.0
      %479 = vmatpush1.msra.mxu0 0.0
      %480 = vmatprep.subr.mxu0 0.0
      %481 = vmatpush1.msra.mxu0 0.0
      %482 = vmatprep.subr.mxu0 0.0
      %483 = vmatpush1.msra.mxu0 0.0
      %484 = vmatprep.subr.mxu0 0.0
      %485 = vmatpush1.msra.mxu0 0.0
      %486 = vmatprep.subr.mxu0 0.0
      %487 = vmatpush1.msra.mxu0 0.0
      %488 = vmatprep.mubr.f32.mxu0 0.0
      %489 = vmatmul.mubr.f32.gmra.mrb[0].mxu0 %v339
      %v490 = vpop.f32.mrb[0].mxu0
      %v491 = vadd.f32 %v422, %v490
      %v492 = vpop.f32.mrb[0].mxu0
      %493 = vdwg.mxu0
      %s494 = scalar_lea.vmem [#allocation7], 64
      %v495 = vld [vmem:[%s494] sm:$0xff]
      %v496 = vld [vmem:[%s494 + $0x8] sm:$0xff]
      %v497 = vld [vmem:[%s494 + $0x10] sm:$0xff]
      %v498 = vld [vmem:[%s494 + $0x18] sm:$0xff]
      %s499 = scalar_lea.vmem %s5, 2
      %v500 = vld [vmem:[%s499] sm:$0x1]
      %v502 = vlaneseq
      %v503 = vshrl.u32 %v502, 7
      %v504 = vsub.s32 0, %v503
      %v505 = vrot.slane %v500, %v504
      %507 = vmatprep.subr.mxu0 0.0
      %508 = vmatpush1.msra.mxu0 %v495
      %509 = vmatprep.subr.mxu0 0.0
      %510 = vmatpush1.msra.mxu0 %v496
      %511 = vmatprep.subr.mxu0 0.0
      %512 = vmatpush1.msra.mxu0 %v497
      %513 = vmatprep.subr.mxu0 0.0
      %514 = vmatpush1.msra.mxu0 %v498
      %515 = vmatprep.subr.mxu0 0.0
      %516 = vmatpush1.msra.mxu0 0.0
      %517 = vmatprep.subr.mxu0 0.0
      %518 = vmatpush1.msra.mxu0 0.0
      %519 = vmatprep.subr.mxu0 0.0
      %520 = vmatpush1.msra.mxu0 0.0
      %521 = vmatprep.subr.mxu0 0.0
      %522 = vmatpush1.msra.mxu0 0.0
      %523 = vmatprep.subr.mxu0 0.0
      %524 = vmatpush1.msra.mxu0 0.0
      %525 = vmatprep.subr.mxu0 0.0
      %526 = vmatpush1.msra.mxu0 0.0
      %527 = vmatprep.subr.mxu0 0.0
      %528 = vmatpush1.msra.mxu0 0.0
      %529 = vmatprep.subr.mxu0 0.0
      %530 = vmatpush1.msra.mxu0 0.0
      %531 = vmatprep.subr.mxu0 0.0
      %532 = vmatpush1.msra.mxu0 0.0
      %533 = vmatprep.subr.mxu0 0.0
      %534 = vmatpush1.msra.mxu0 0.0
      %535 = vmatprep.subr.mxu0 0.0
      %536 = vmatpush1.msra.mxu0 0.0
      %537 = vmatprep.subr.mxu0 0.0
      %538 = vmatpush1.msra.mxu0 0.0
      %539 = vmatprep.subr.mxu0 0.0
      %540 = vmatpush1.msra.mxu0 0.0
      %541 = vmatprep.subr.mxu0 0.0
      %542 = vmatpush1.msra.mxu0 0.0
      %543 = vmatprep.subr.mxu0 0.0
      %544 = vmatpush1.msra.mxu0 0.0
      %545 = vmatprep.subr.mxu0 0.0
      %546 = vmatpush1.msra.mxu0 0.0
      %547 = vmatprep.subr.mxu0 0.0
      %548 = vmatpush1.msra.mxu0 0.0
      %549 = vmatprep.subr.mxu0 0.0
      %550 = vmatpush1.msra.mxu0 0.0
      %551 = vmatprep.subr.mxu0 0.0
      %552 = vmatpush1.msra.mxu0 0.0
      %553 = vmatprep.subr.mxu0 0.0
      %554 = vmatpush1.msra.mxu0 0.0
      %555 = vmatprep.subr.mxu0 0.0
      %556 = vmatpush1.msra.mxu0 0.0
      %557 = vmatprep.subr.mxu0 0.0
      %558 = vmatpush1.msra.mxu0 0.0
      %559 = vmatprep.subr.mxu0 0.0
      %560 = vmatpush1.msra.mxu0 0.0
      %561 = vmatprep.subr.mxu0 0.0
      %562 = vmatpush1.msra.mxu0 0.0
      %563 = vmatprep.subr.mxu0 0.0
      %564 = vmatpush1.msra.mxu0 0.0
      %565 = vmatprep.subr.mxu0 0.0
      %566 = vmatpush1.msra.mxu0 0.0
      %567 = vmatprep.subr.mxu0 0.0
      %568 = vmatpush1.msra.mxu0 0.0
      %569 = vmatprep.subr.mxu0 0.0
      %570 = vmatpush1.msra.mxu0 0.0
      %571 = vmatprep.mubr.f32.mxu0 0.0
      %572 = vmatmul.mubr.f32.gmra.mrb[0].mxu0 %v339
      %v573 = vpop.f32.mrb[0].mxu0
      %v574 = vadd.f32 %v505, %v573
      %v575 = vpop.f32.mrb[0].mxu0
      %576 = vdwg.mxu0
      %v577 = vadd.f32 %v158, %v408
      %v578 = vxor.u32 %v577, 2147483648
      %v579 = vmul.f32 %v578, 1.442695
      %v580 = vpow.pop %v579
      %v581 = vadd.f32 %v580, 1.0
      %v582 = vrcp.pop %v581
      %v583 = vmul.f32 1.0, %v582
      %v584 = vadd.f32 %v241, %v491
      %v585 = vxor.u32 %v584, 2147483648
      %v586 = vmul.f32 %v585, 1.442695
      %v587 = vpow.pop %v586
      %v588 = vadd.f32 %v587, 1.0
      %v589 = vrcp.pop %v588
      %v590 = vmul.f32 1.0, %v589
      %v591 = vmul.f32 %v583, %v574
      %v592 = vadd.f32 %v324, %v591
      %v593 = vtanh.pop %v592
      %v594 = vsub.f32 1.0, %v590
      %v595 = vmul.f32 %v594, %v593
      %v596 = vmul.f32 %v590, %v72
      %v597 = vadd.f32 %v595, %v596
      %v598 = vstv %s67
      %vm599 = vcmp.lt.s32.totalorder %v598, %v65
      %v600 = vsel %vm599, 1, 0
      %601 = vset.pattern.permute.xlu0 0
      %602 = vperm.xlu0 %601, %v600
      %v603 = vpop.permute.xlu0 %602
      %vm604 = vcmp.eq.s32.totalorder %v603, 1
      %v605 = vsel %vm604, %v597, %v72
    $region42: #{tpu_custom_call.1} parent=1 // loop_footer
      %s71 = sadd.s32 1, %s67
    $region43: #{tpu_custom_call.1} parent=1 // loop_footer_branch
      %66 = sbr.rel target = $region39
    $region44: #{tpu_custom_call.1} parent=1 // loop_exit
      _
    %vm606 = vcmask 254976
    %607 = vst.msk [vmem:[#allocation8] sm:$0x3] %vm606, %v72
    // Predicated region
    $region45: #{tpu_custom_call.1} parent=1 // pred_check
      _
    $region46: #{tpu_custom_call.1} parent=1 // pred_check_branch
      %609 = sbr.rel (0) target = $region48
    $region47: #{tpu_custom_call.1} parent=1 // pred_region
      %s611 = ssub.s32 32, 32
      %612 = vsyncadd [#allocation4], %s611
      %s614 = sshll.u32 [#allocation8], 4
      %s615 = int_to_ptr.vmem [resolvable:$true] %s614
      %617 = dma.vmem_to_hbm [thread:$0]  %s615, 32, %s6, [#allocation4]
    $region48: #{tpu_custom_call.1} parent=1 // pred_fallthru
      _
    // Predicated region
    $region49: #{tpu_custom_call.1} parent=1 // pred_check
      _
    $region50: #{tpu_custom_call.1} parent=1 // pred_check_branch
      %619 = sbr.rel (0) target = $region52
    $region51: #{tpu_custom_call.1} parent=1 // pred_region
      %620 = dma.done [#allocation4], 32
    $region52: #{tpu_custom_call.1} parent=1 // pred_fallthru
      _
    %621 = vsyncpa [#allocation3], 1
    %622 = vsyncpa [#allocation6], 1
    %623 = vsyncpa [#allocation4], 1

</llo_original>
